<compile_context>
chip_gen: v7x
topology: tpu7x:2x2x1
jax: 0.10.0
libtpu: 0.0.40
codegen_flags: <defaults>
</compile_context>

<pallas_src>
from functools import lru_cache

import numpy as np
import jax
import jax.numpy as jnp
from jax.experimental import pallas as pl
from jax.experimental.pallas import tpu as pltpu


# ----------------------------------------------------------------------------- kernel
def _shortcut_p_kernel(x_ref, m_ref, o_ref):
    # x_ref: (Rb, K)   m_ref: (K, Q)   o_ref: (Rb, Q)
    x = x_ref[...]
    m = m_ref[...]
    if x.dtype != m.dtype:                      # static (trace-time) decision;
        x = x.astype(m.dtype)                   # only hit for int/exotic dtypes
    o_ref[...] = jnp.dot(x, m, preferred_element_type=jnp.float32).astype(o_ref.dtype)


# ----------------------------------------------------------------------------- helpers
@lru_cache(maxsize=32)
def _pool_matrix_np(W, G):
    """Block-diagonal (G*2W, G*Wo) f32 matrix: 0.25 at the 4 taps per output pixel.

    One 2W segment = a pair of adjacent input rows [row 2*ho | row 2*ho+1]."""
    Wo = W // 2
    j = np.arange(2 * W)
    w = j % W
    m2 = (w[:, None] // 2 == np.arange(Wo)[None, :]).astype(np.float32) * np.float32(0.25)
    K, Q = m2.shape
    mg = np.zeros((G * K, G * Q), dtype=np.float32)
    for g in range(G):
        mg[g * K:(g + 1) * K, g * Q:(g + 1) * Q] = m2
    return mg


def _vmem_capacity_bytes():
    try:
        return int(pltpu.get_tpu_info().vmem_capacity_bytes)
    except Exception:
        return 64 << 20                         # v7x-conservative default


def _pick_group(rows2, W):
    """Group G consecutive row-pairs per kernel row so Q = G*Wo >= 128 (lane-dense
    output) while keeping M tiny.  G must divide rows2 (free contiguous reshape)."""
    Wo = max(1, W // 2)
    g_target = min(rows2, max(1, -(-128 // Wo)))            # ceil(128/Wo)
    g_cap = min(rows2, max(g_target, max(1, 1024 // max(1, W))))
    best_lt = 1
    for g in range(1, g_cap + 1):
        if rows2 % g == 0:
            if g >= g_target:
                return g
            best_lt = g
    return best_lt


def _pick_row_block(rows, bytes_per_row, granularity, target_bytes, min_steps=4):
    """Largest legal row block (multiple of sublane granularity, dividing rows)
    within target bytes; prefer >= min_steps grid steps (v7x: 2 per TensorCore)."""
    cands = [r for r in range(granularity, rows + 1, granularity) if rows % r == 0]
    if not cands:
        return rows                              # tiny rows: full extent is legal
    fitting = [r for r in cands if r * bytes_per_row <= target_bytes] or [cands[0]]
    for steps in (min_steps, 2):
        ok = [r for r in fitting if rows // r >= steps]
        if ok:
            return max(ok)
    return max(fitting)


# ----------------------------------------------------------------------------- wrapper
def shortcut_p(x, *, target_block_bytes=None):
    N, C, H, W = x.shape
    Ho, Wo = H // 2, W // 2
    if Ho == 0 or Wo == 0:
        raise ValueError("ShortcutP requires H >= 2 and W >= 2 for AvgPool2d(2).")
    if H != 2 * Ho or W != 2 * Wo:               # PyTorch floor-mode: drop trailing row/col
        x = x[:, :, : 2 * Ho, : 2 * Wo]
        H, W = 2 * Ho, 2 * Wo

    rows2 = N * C * Ho                           # one kernel "segment" per output row
    G = _pick_group(rows2, W)
    Rg = rows2 // G
    K = G * 2 * W                                # input lane dim  (= 4*Q typically >= 512)
    Q = G * Wo                                   # output lane dim (>= 128 when achievable)

    # Free contiguous reshapes only (no data movement).
    xg = x.reshape(Rg, K)

    # Constant pooling matrix: input dtype for bf16/f16 (exact 0.25), f32 otherwise.
    if x.dtype == jnp.bfloat16 or x.dtype == jnp.float16:
        m_dtype = x.dtype
    else:
        m_dtype = jnp.float32
    m = jnp.asarray(_pool_matrix_np(W, G), dtype=m_dtype)

    x_item = x.dtype.itemsize
    m_item = np.dtype(m_dtype).itemsize
    o_item = x.dtype.itemsize

    # Block sizing: dtype-aware sublane granularity, VMEM-capacity-aware target.
    vmem_cap = _vmem_capacity_bytes()
    if target_block_bytes is None:
        target_block_bytes = max(1 << 20, vmem_cap // 16)   # ~8 MiB on 128 MiB, ~4 MiB on 64 MiB
    granularity = max(8, 32 // max(1, x_item))               # 8 (f32) / 16 (bf16) / 32 (int8)
    bytes_per_row = K * x_item + Q * o_item
    Rb = _pick_row_block(Rg, bytes_per_row, granularity, target_block_bytes, min_steps=4)
    grid = (Rg // Rb,)

    # Explicit VMEM budget from actual (double-buffered) block sizes.
    need = 2 * Rb * K * x_item + 2 * K * Q * m_item + 2 * Rb * Q * o_item
    vmem_limit = min(max(int(need * 1.5) + (1 << 20), 16 << 20), (vmem_cap * 3) // 4)
    vmem_limit = max(vmem_limit, need + (1 << 20))

    cost = pl.CostEstimate(
        flops=2 * Rg * K * Q,
        transcendentals=0,
        bytes_accessed=Rg * K * x_item + K * Q * m_item + Rg * Q * o_item,
    )

    pooled_flat = pl.pallas_call(
        _shortcut_p_kernel,
        out_shape=jax.ShapeDtypeStruct((Rg, Q), x.dtype),
        grid=grid,
        in_specs=[
            pl.BlockSpec((Rb, K), lambda i: (i, 0)),
            pl.BlockSpec((K, Q), lambda i: (0, 0)),          # tiny constant block
        ],
        out_specs=pl.BlockSpec((Rb, Q), lambda i: (i, 0)),
        compiler_params=pltpu.CompilerParams(
            dimension_semantics=("parallel",),
            vmem_limit_bytes=int(vmem_limit),
        ),
        cost_estimate=cost,
    )(xg, m)

    pooled = pooled_flat.reshape(N, C, Ho, Wo)
    # Channel concat with zeros done wrapper-side (fusable; halves kernel HBM writes).
    return jnp.concatenate([pooled, jnp.zeros_like(pooled)], axis=1)


# ----------------------------------------------------------------------------- reference
def _reference(x):
    # Pure-JAX reference (PyTorch ShortcutP semantics), computed in f32.
    x = x.astype(jnp.float32)
    Ho, Wo = x.shape[2] // 2, x.shape[3] // 2
    x = x[:, :, : 2 * Ho, : 2 * Wo]
    pooled = 0.25 * (
        x[:, :, 0::2, 0::2]
        + x[:, :, 0::2, 1::2]
        + x[:, :, 1::2, 0::2]
        + x[:, :, 1::2, 1::2]
    )
    return jnp.concatenate([pooled, jnp.zeros_like(pooled)], axis=1)


if __name__ == "__main__":
    key = jax.random.PRNGKey(0)
    k1, k2 = jax.random.split(key)

    # f32, shortcut-typical tiny shape.
    x32 = jax.random.normal(k1, (2, 4, 16, 16), dtype=jnp.float32)
    out32 = jax.block_until_ready(shortcut_p(x32))
    ref32 = _reference(x32)
    assert out32.shape == (2, 8, 8, 8), out32.shape
    assert jnp.allclose(out32, ref32, atol=1e-5, rtol=1e-5), "f32 mismatch vs reference"

    # bf16 path (native MXU dtype, no in-kernel upcast) with a multi-step grid.
    xbf = jax.random.normal(k2, (2, 8, 32, 32), dtype=jnp.bfloat16)
    outbf = jax.block_until_ready(shortcut_p(xbf))
    refbf = _reference(xbf).astype(jnp.bfloat16)
    assert outbf.shape == (2, 16, 16, 16), outbf.shape
    assert jnp.allclose(outbf.astype(jnp.float32), refbf.astype(jnp.float32),
                        atol=1e-2, rtol=1e-2), "bf16 mismatch vs reference"

    print("KERNEL_OK")
</pallas_src>

<mosaic_0001>
module attributes {stable_mosaic.version = 11 : i64} {
  func.func @_shortcut_p_kernel(%arg0: i32, %arg1: memref<4x512xf32, #tpu.memory_space<vmem>>, %arg2: memref<512x128xf32, #tpu.memory_space<vmem>>, %arg3: memref<4x128xf32, #tpu.memory_space<vmem>>) attributes {dimension_semantics = [#tpu.dimension_semantics<parallel>], iteration_bounds = array<i64: 1>, scalar_prefetch = 0 : i64, scratch_operands = 0 : i64, tpu.core_type = #tpu.core_type<tc>, window_params = [{transform_indices = @transform_0, window_bounds = array<i64: 4, 512>}, {pipeline_mode = #tpu.pipeline_mode<synchronous>, transform_indices = @transform_1, window_bounds = array<i64: 512, 128>}, {transform_indices = @transform_2, window_bounds = array<i64: 4, 128>}]} {
    %c0 = arith.constant 0 : index
    %c0_0 = arith.constant 0 : index
    %0 = vector.load %arg1[%c0, %c0_0] : memref<4x512xf32, #tpu.memory_space<vmem>>, vector<4x512xf32>
    %c0_1 = arith.constant 0 : index
    %c0_2 = arith.constant 0 : index
    %1 = vector.load %arg2[%c0_1, %c0_2] : memref<512x128xf32, #tpu.memory_space<vmem>>, vector<512x128xf32>
    %cst = arith.constant dense<0.000000e+00> : vector<4x128xf32>
    %2 = tpu.matmul %0, %1, %cst {dimension_numbers = #tpu.dot_dimension_numbers<[1], [0], [0], [1], [0, 0, 1, 1], [], []>} : vector<4x512xf32>, vector<512x128xf32>, vector<4x128xf32> -> vector<4x128xf32>
    %c0_3 = arith.constant 0 : index
    %c0_4 = arith.constant 0 : index
    %3 = vector.load %arg3[%c0_3, %c0_4] : memref<4x128xf32, #tpu.memory_space<vmem>>, vector<4x128xf32>
    tpu.vector_store %arg3[%c0_3, %c0_4], %2 {strides = array<i32>} : memref<4x128xf32, #tpu.memory_space<vmem>>, vector<4x128xf32>,
    return
  }
  func.func @transform_0(%arg0: i32) -> (i32, i32) {
    %c0_i32 = arith.constant 0 : i32
    %c0_i32_0 = arith.constant 0 : i32
    return %arg0, %c0_i32 : i32, i32
  }
  func.func @transform_1(%arg0: i32) -> (i32, i32) {
    %c0_i32 = arith.constant 0 : i32
    %c0_i32_0 = arith.constant 0 : i32
    %c0_i32_1 = arith.constant 0 : i32
    return %c0_i32, %c0_i32_0 : i32, i32
  }
  func.func @transform_2(%arg0: i32) -> (i32, i32) {
    %c0_i32 = arith.constant 0 : i32
    %c0_i32_0 = arith.constant 0 : i32
    return %arg0, %c0_i32 : i32, i32
  }
}

</mosaic_0001>

<llo_original>
// kernel: tpu_custom_call.1
$region0: #{tpu_custom_call.1}
  #allocation0 [shape = 'u32[]', space=smem, size = 0x4, offset = 0x4, fixed_abs, tag = 'smem constant byte address 0x4 - core index']
  #allocation1 [shape = 'u32[144,128]{1,0:T(1,128)}', space=vmem, size = 0x12000, scoped, tag = 'internal scratch']
  %s0 = inlined_call_operand.hbm [shape: f32[4,512], index: 0, kind: input, shape index: {}]
  %s1 = inlined_call_operand.hbm [shape: f32[512,128], index: 1, kind: input, shape index: {}]
  %s2 = inlined_call_operand.hbm [shape: f32[4,128], index: 2, kind: output, shape index: {}]
  %s3 = sld [smem:[#allocation0]]
  $region26: #{tpu_custom_call.1} parent=0
    _
  %s5 = ssub.s32 1, %s3
  %s6 = scalar_select 0, %s5, %s3
  $region1: #{tpu_custom_call.1} parent=0
    #allocation2 [shape = 'u8[8192]{0}', space=vmem, size = 0x2000, scoped, tag = 'input window, operand 0, single buffered']
    #allocation3 [shape = 's32[1]{0}', space=sflag, size = 0x4, scoped, tag = 'scoped memory for tpu_custom_call.1']
    #allocation4 [shape = 's32[1]{0}', space=sflag, size = 0x4, scoped, tag = 'scoped memory for tpu_custom_call.1']
    #allocation5 [shape = 'u8[262144]{0}', space=vmem, size = 0x40000, scoped, tag = 'input window, operand 1, single buffered']
    #allocation6 [shape = 's32[1]{0}', space=sflag, size = 0x4, scoped, tag = 'scoped memory for tpu_custom_call.1']
    #allocation7 [shape = 'u8[2048]{0}', space=vmem, size = 0x800, scoped, tag = 'output window, operand 0, single buffered']
    %7 = vsyncpa [#allocation3], 0
    %8 = vsyncpa [#allocation6], 0
    %9 = vsyncpa [#allocation4], 0
    // Predicated region
    $region2: #{tpu_custom_call.1} parent=1 // pred_check
      _
    $region3: #{tpu_custom_call.1} parent=1 // pred_check_branch
      %11 = sbr.rel (0) target = $region5
    $region4: #{tpu_custom_call.1} parent=1 // pred_region
      %s13 = ssub.s32 256, 256
      %14 = vsyncadd [#allocation3], %s13
      %s16 = sshll.u32 [#allocation2], 4
      %s17 = int_to_ptr.vmem [resolvable:$true] %s16
      %19 = dma.hbm_to_vmem [thread:$0]  %s0, 256, %s17, [#allocation3]
    $region5: #{tpu_custom_call.1} parent=1 // pred_fallthru
      _
    // Predicated region
    $region6: #{tpu_custom_call.1} parent=1 // pred_check
      _
    $region7: #{tpu_custom_call.1} parent=1 // pred_check_branch
      %21 = sbr.rel (0) target = $region9
    $region8: #{tpu_custom_call.1} parent=1 // pred_region
      %s23 = ssub.s32 8192, 8192
      %24 = vsyncadd [#allocation6], %s23
      %s25 = sshll.u32 [#allocation5], 4
      %s26 = int_to_ptr.vmem [resolvable:$true] %s25
      %31 = dma.hbm_to_vmem [thread:$0]  %s1, 8192, %s26, [#allocation6], 128, 128, 8
    $region9: #{tpu_custom_call.1} parent=1 // pred_fallthru
      _
    // Predicated region
    $region10: #{tpu_custom_call.1} parent=1 // pred_check
      _
    $region11: #{tpu_custom_call.1} parent=1 // pred_check_branch
      %33 = sbr.rel (0) target = $region13
    $region12: #{tpu_custom_call.1} parent=1 // pred_region
      %34 = dma.done [#allocation3], 256
    $region13: #{tpu_custom_call.1} parent=1 // pred_fallthru
      _
    // Predicated region
    $region14: #{tpu_custom_call.1} parent=1 // pred_check
      _
    $region15: #{tpu_custom_call.1} parent=1 // pred_check_branch
      %36 = sbr.rel (0) target = $region17
    $region16: #{tpu_custom_call.1} parent=1 // pred_region
      %37 = dma.done [#allocation6], 8192
    $region17: #{tpu_custom_call.1} parent=1 // pred_fallthru
      _
    %v38 = vld [vmem:[#allocation2] sm:$0xff]
    %v39 = vld [vmem:[#allocation2 + $0x8] sm:$0xff]
    %v40 = vld [vmem:[#allocation5] sm:$0xff]
    %v41 = vld [vmem:[#allocation5 + $0x8] sm:$0xff]
    %v42 = vld [vmem:[#allocation5 + $0x10] sm:$0xff]
    %v43 = vld [vmem:[#allocation5 + $0x18] sm:$0xff]
    %v44 = vld [vmem:[#allocation5 + $0x20] sm:$0xff]
    %v45 = vld [vmem:[#allocation5 + $0x28] sm:$0xff]
    %v46 = vld [vmem:[#allocation5 + $0x30] sm:$0xff]
    %v47 = vld [vmem:[#allocation5 + $0x38] sm:$0xff]
    %v48 = vld [vmem:[#allocation5 + $0x40] sm:$0xff]
    %v49 = vld [vmem:[#allocation5 + $0x48] sm:$0xff]
    %v50 = vld [vmem:[#allocation5 + $0x50] sm:$0xff]
    %v51 = vld [vmem:[#allocation5 + $0x58] sm:$0xff]
    %v52 = vld [vmem:[#allocation5 + $0x60] sm:$0xff]
    %v53 = vld [vmem:[#allocation5 + $0x68] sm:$0xff]
    %v54 = vld [vmem:[#allocation5 + $0x70] sm:$0xff]
    %v55 = vld [vmem:[#allocation5 + $0x78] sm:$0xff]
    %v56 = vld [vmem:[#allocation5 + $0x80] sm:$0xff]
    %v57 = vld [vmem:[#allocation5 + $0x88] sm:$0xff]
    %v58 = vld [vmem:[#allocation5 + $0x90] sm:$0xff]
    %v59 = vld [vmem:[#allocation5 + $0x98] sm:$0xff]
    %v60 = vld [vmem:[#allocation5 + $0xa0] sm:$0xff]
    %v61 = vld [vmem:[#allocation5 + $0xa8] sm:$0xff]
    %v62 = vld [vmem:[#allocation5 + $0xb0] sm:$0xff]
    %v63 = vld [vmem:[#allocation5 + $0xb8] sm:$0xff]
    %v64 = vld [vmem:[#allocation5 + $0xc0] sm:$0xff]
    %v65 = vld [vmem:[#allocation5 + $0xc8] sm:$0xff]
    %v66 = vld [vmem:[#allocation5 + $0xd0] sm:$0xff]
    %v67 = vld [vmem:[#allocation5 + $0xd8] sm:$0xff]
    %v68 = vld [vmem:[#allocation5 + $0xe0] sm:$0xff]
    %v69 = vld [vmem:[#allocation5 + $0xe8] sm:$0xff]
    %v70 = vld [vmem:[#allocation5 + $0xf0] sm:$0xff]
    %v71 = vld [vmem:[#allocation5 + $0xf8] sm:$0xff]
    %v72 = vld [vmem:[#allocation5 + $0x100] sm:$0xff]
    %v73 = vld [vmem:[#allocation5 + $0x108] sm:$0xff]
    %v74 = vld [vmem:[#allocation5 + $0x110] sm:$0xff]
    %v75 = vld [vmem:[#allocation5 + $0x118] sm:$0xff]
    %v76 = vld [vmem:[#allocation5 + $0x120] sm:$0xff]
    %v77 = vld [vmem:[#allocation5 + $0x128] sm:$0xff]
    %v78 = vld [vmem:[#allocation5 + $0x130] sm:$0xff]
    %v79 = vld [vmem:[#allocation5 + $0x138] sm:$0xff]
    %v80 = vld [vmem:[#allocation5 + $0x140] sm:$0xff]
    %v81 = vld [vmem:[#allocation5 + $0x148] sm:$0xff]
    %v82 = vld [vmem:[#allocation5 + $0x150] sm:$0xff]
    %v83 = vld [vmem:[#allocation5 + $0x158] sm:$0xff]
    %v84 = vld [vmem:[#allocation5 + $0x160] sm:$0xff]
    %v85 = vld [vmem:[#allocation5 + $0x168] sm:$0xff]
    %v86 = vld [vmem:[#allocation5 + $0x170] sm:$0xff]
    %v87 = vld [vmem:[#allocation5 + $0x178] sm:$0xff]
    %v88 = vld [vmem:[#allocation5 + $0x180] sm:$0xff]
    %v89 = vld [vmem:[#allocation5 + $0x188] sm:$0xff]
    %v90 = vld [vmem:[#allocation5 + $0x190] sm:$0xff]
    %v91 = vld [vmem:[#allocation5 + $0x198] sm:$0xff]
    %v92 = vld [vmem:[#allocation5 + $0x1a0] sm:$0xff]
    %v93 = vld [vmem:[#allocation5 + $0x1a8] sm:$0xff]
    %v94 = vld [vmem:[#allocation5 + $0x1b0] sm:$0xff]
    %v95 = vld [vmem:[#allocation5 + $0x1b8] sm:$0xff]
    %v96 = vld [vmem:[#allocation5 + $0x1c0] sm:$0xff]
    %v97 = vld [vmem:[#allocation5 + $0x1c8] sm:$0xff]
    %v98 = vld [vmem:[#allocation5 + $0x1d0] sm:$0xff]
    %v99 = vld [vmem:[#allocation5 + $0x1d8] sm:$0xff]
    %v100 = vld [vmem:[#allocation5 + $0x1e0] sm:$0xff]
    %v101 = vld [vmem:[#allocation5 + $0x1e8] sm:$0xff]
    %v102 = vld [vmem:[#allocation5 + $0x1f0] sm:$0xff]
    %v103 = vld [vmem:[#allocation5 + $0x1f8] sm:$0xff]
    %v106 = vcombine.high %v38, %v38
    %v107 = vcombine.high %v39, %v39
    %110 = vmatprep.subr.mxu0 0.0
    %111 = vmatpush1.msra.mxu0 %v40
    %112 = vmatprep.subr.mxu0 0.0
    %113 = vmatpush1.msra.mxu0 %v41
    %114 = vmatprep.subr.mxu0 0.0
    %115 = vmatpush1.msra.mxu0 %v42
    %116 = vmatprep.subr.mxu0 0.0
    %117 = vmatpush1.msra.mxu0 %v43
    %118 = vmatprep.subr.mxu0 0.0
    %119 = vmatpush1.msra.mxu0 %v44
    %120 = vmatprep.subr.mxu0 0.0
    %121 = vmatpush1.msra.mxu0 %v45
    %122 = vmatprep.subr.mxu0 0.0
    %123 = vmatpush1.msra.mxu0 %v46
    %124 = vmatprep.subr.mxu0 0.0
    %125 = vmatpush1.msra.mxu0 %v47
    %126 = vmatprep.subr.mxu0 0.0
    %127 = vmatpush1.msra.mxu0 %v48
    %128 = vmatprep.subr.mxu0 0.0
    %129 = vmatpush1.msra.mxu0 %v49
    %130 = vmatprep.subr.mxu0 0.0
    %131 = vmatpush1.msra.mxu0 %v50
    %132 = vmatprep.subr.mxu0 0.0
    %133 = vmatpush1.msra.mxu0 %v51
    %134 = vmatprep.subr.mxu0 0.0
    %135 = vmatpush1.msra.mxu0 %v52
    %136 = vmatprep.subr.mxu0 0.0
    %137 = vmatpush1.msra.mxu0 %v53
    %138 = vmatprep.subr.mxu0 0.0
    %139 = vmatpush1.msra.mxu0 %v54
    %140 = vmatprep.subr.mxu0 0.0
    %141 = vmatpush1.msra.mxu0 %v55
    %142 = vmatprep.subr.mxu0 0.0
    %143 = vmatpush1.msra.mxu0 %v56
    %144 = vmatprep.subr.mxu0 0.0
    %145 = vmatpush1.msra.mxu0 %v57
    %146 = vmatprep.subr.mxu0 0.0
    %147 = vmatpush1.msra.mxu0 %v58
    %148 = vmatprep.subr.mxu0 0.0
    %149 = vmatpush1.msra.mxu0 %v59
    %150 = vmatprep.subr.mxu0 0.0
    %151 = vmatpush1.msra.mxu0 %v60
    %152 = vmatprep.subr.mxu0 0.0
    %153 = vmatpush1.msra.mxu0 %v61
    %154 = vmatprep.subr.mxu0 0.0
    %155 = vmatpush1.msra.mxu0 %v62
    %156 = vmatprep.subr.mxu0 0.0
    %157 = vmatpush1.msra.mxu0 %v63
    %158 = vmatprep.subr.mxu0 0.0
    %159 = vmatpush1.msra.mxu0 %v64
    %160 = vmatprep.subr.mxu0 0.0
    %161 = vmatpush1.msra.mxu0 %v65
    %162 = vmatprep.subr.mxu0 0.0
    %163 = vmatpush1.msra.mxu0 %v66
    %164 = vmatprep.subr.mxu0 0.0
    %165 = vmatpush1.msra.mxu0 %v67
    %166 = vmatprep.subr.mxu0 0.0
    %167 = vmatpush1.msra.mxu0 %v68
    %168 = vmatprep.subr.mxu0 0.0
    %169 = vmatpush1.msra.mxu0 %v69
    %170 = vmatprep.subr.mxu0 0.0
    %171 = vmatpush1.msra.mxu0 %v70
    %172 = vmatprep.subr.mxu0 0.0
    %173 = vmatpush1.msra.mxu0 %v71
    %174 = vmatprep.mubr.f32.mxu0 %v106
    %175 = vmatmul.mubr.f32.gmra.mrb[0].mxu0 %v38
    %v176 = vpop.f32.mrb[0].mxu0
    %v177 = vadd.f32 0.0, %v176
    %v178 = vpop.f32.mrb[0].mxu0
    %179 = vdwg.mxu0
    %180 = vmatprep.subr.mxu0 0.0
    %181 = vmatpush1.msra.mxu0 %v72
    %182 = vmatprep.subr.mxu0 0.0
    %183 = vmatpush1.msra.mxu0 %v73
    %184 = vmatprep.subr.mxu0 0.0
    %185 = vmatpush1.msra.mxu0 %v74
    %186 = vmatprep.subr.mxu0 0.0
    %187 = vmatpush1.msra.mxu0 %v75
    %188 = vmatprep.subr.mxu0 0.0
    %189 = vmatpush1.msra.mxu0 %v76
    %190 = vmatprep.subr.mxu0 0.0
    %191 = vmatpush1.msra.mxu0 %v77
    %192 = vmatprep.subr.mxu0 0.0
    %193 = vmatpush1.msra.mxu0 %v78
    %194 = vmatprep.subr.mxu0 0.0
    %195 = vmatpush1.msra.mxu0 %v79
    %196 = vmatprep.subr.mxu0 0.0
    %197 = vmatpush1.msra.mxu0 %v80
    %198 = vmatprep.subr.mxu0 0.0
    %199 = vmatpush1.msra.mxu0 %v81
    %200 = vmatprep.subr.mxu0 0.0
    %201 = vmatpush1.msra.mxu0 %v82
    %202 = vmatprep.subr.mxu0 0.0
    %203 = vmatpush1.msra.mxu0 %v83
    %204 = vmatprep.subr.mxu0 0.0
    %205 = vmatpush1.msra.mxu0 %v84
    %206 = vmatprep.subr.mxu0 0.0
    %207 = vmatpush1.msra.mxu0 %v85
    %208 = vmatprep.subr.mxu0 0.0
    %209 = vmatpush1.msra.mxu0 %v86
    %210 = vmatprep.subr.mxu0 0.0
    %211 = vmatpush1.msra.mxu0 %v87
    %212 = vmatprep.subr.mxu0 0.0
    %213 = vmatpush1.msra.mxu0 %v88
    %214 = vmatprep.subr.mxu0 0.0
    %215 = vmatpush1.msra.mxu0 %v89
    %216 = vmatprep.subr.mxu0 0.0
    %217 = vmatpush1.msra.mxu0 %v90
    %218 = vmatprep.subr.mxu0 0.0
    %219 = vmatpush1.msra.mxu0 %v91
    %220 = vmatprep.subr.mxu0 0.0
    %221 = vmatpush1.msra.mxu0 %v92
    %222 = vmatprep.subr.mxu0 0.0
    %223 = vmatpush1.msra.mxu0 %v93
    %224 = vmatprep.subr.mxu0 0.0
    %225 = vmatpush1.msra.mxu0 %v94
    %226 = vmatprep.subr.mxu0 0.0
    %227 = vmatpush1.msra.mxu0 %v95
    %228 = vmatprep.subr.mxu0 0.0
    %229 = vmatpush1.msra.mxu0 %v96
    %230 = vmatprep.subr.mxu0 0.0
    %231 = vmatpush1.msra.mxu0 %v97
    %232 = vmatprep.subr.mxu0 0.0
    %233 = vmatpush1.msra.mxu0 %v98
    %234 = vmatprep.subr.mxu0 0.0
    %235 = vmatpush1.msra.mxu0 %v99
    %236 = vmatprep.subr.mxu0 0.0
    %237 = vmatpush1.msra.mxu0 %v100
    %238 = vmatprep.subr.mxu0 0.0
    %239 = vmatpush1.msra.mxu0 %v101
    %240 = vmatprep.subr.mxu0 0.0
    %241 = vmatpush1.msra.mxu0 %v102
    %242 = vmatprep.subr.mxu0 0.0
    %243 = vmatpush1.msra.mxu0 %v103
    %244 = vmatprep.mubr.f32.mxu0 %v107
    %245 = vmatmul.mubr.f32.gmra.mrb[0].mxu0 %v39
    %v246 = vpop.f32.mrb[0].mxu0
    %v247 = vadd.f32 %v177, %v246
    %v248 = vpop.f32.mrb[0].mxu0
    %249 = vdwg.mxu0
    %250 = vst [vmem:[#allocation7] sm:$0xf] %v247
    // Predicated region
    $region18: #{tpu_custom_call.1} parent=1 // pred_check
      _
    $region19: #{tpu_custom_call.1} parent=1 // pred_check_branch
      %252 = sbr.rel (0) target = $region21
    $region20: #{tpu_custom_call.1} parent=1 // pred_region
      %s254 = ssub.s32 64, 64
      %255 = vsyncadd [#allocation4], %s254
      %s257 = sshll.u32 [#allocation7], 4
      %s258 = int_to_ptr.vmem [resolvable:$true] %s257
      %260 = dma.vmem_to_hbm [thread:$0]  %s258, 64, %s2, [#allocation4]
    $region21: #{tpu_custom_call.1} parent=1 // pred_fallthru
      _
    // Predicated region
    $region22: #{tpu_custom_call.1} parent=1 // pred_check
      _
    $region23: #{tpu_custom_call.1} parent=1 // pred_check_branch
      %262 = sbr.rel (0) target = $region25
    $region24: #{tpu_custom_call.1} parent=1 // pred_region
      %263 = dma.done [#allocation4], 64
    $region25: #{tpu_custom_call.1} parent=1 // pred_fallthru
      _
    %264 = vsyncpa [#allocation3], 1
    %265 = vsyncpa [#allocation6], 1
    %266 = vsyncpa [#allocation4], 1

</llo_original>
